<compile_context>
chip_gen: v7x
topology: tpu7x:2x2x1
jax: 0.10.0
libtpu: 0.0.40
codegen_flags: <defaults>
</compile_context>

<pallas_src>
import functools

import numpy as np
import jax
import jax.numpy as jnp
from jax.experimental import pallas as pl
from jax.experimental.pallas import tpu as pltpu

# ---------------------------------------------------------------- constants
N_FREQ = 495     # frequency bins out of the (stand-in) MIDI front-end
N_KEY = 99       # after MaxPool2d((1, 5)): 495 / 5
N_PITCH = 88     # piano keys
HOP = 512        # audio hop per frame (stand-in front-end framing)
HDC_DILATIONS = tuple(int(round(12 * np.log2(a))) for a in range(2, 10))  # n_per_pitch=1

LANE = 128
SUBLANE = 8


def _ceil_to(v, m):
    return ((v + m - 1) // m) * m


def _tile(dim, pref, align):
    """Tile size (multiple of `align`, capped at `pref`) plus the padded dim."""
    t = min(pref, _ceil_to(dim, align))
    return t, _ceil_to(dim, t)


def sinusoids(length, channels, max_timescale=500):
    assert channels % 2 == 0
    log_inc = np.log(max_timescale) / (channels // 2 - 1)
    inv = np.exp(-log_inc * np.arange(channels // 2))
    scaled = np.arange(length)[:, None] * inv[None, :]
    return jnp.asarray(np.concatenate([np.sin(scaled), np.cos(scaled)], axis=1),
                       jnp.float32)


# ---------------------------------------------------------------- tiled matmul (+bias, +act)
def _mm_kernel(x_ref, w_ref, b_ref, o_ref, acc_ref, *, act):
    @pl.when(pl.program_id(2) == 0)
    def _():
        # Initialise the accumulator with the broadcast bias (saves the epilogue add).
        acc_ref[...] = jnp.broadcast_to(b_ref[...], acc_ref.shape)

    acc_ref[...] += jnp.dot(x_ref[...], w_ref[...],
                            preferred_element_type=jnp.float32)

    @pl.when(pl.program_id(2) == pl.num_programs(2) - 1)
    def _():
        y = acc_ref[...]
        if act == "relu":
            y = jnp.maximum(y, 0.0)
        elif act == "log1p_abs":
            y = jnp.log(jnp.abs(y) + 1.0)
        o_ref[...] = y.astype(o_ref.dtype)


def matmul_bias(x, w, b, act="none", out_dtype=jnp.bfloat16):
    """y = act(x @ w + b); x:(M,K), w:(K,N), b:(N,). bf16 MXU in, f32 accumulate."""
    M, K = x.shape
    N = w.shape[1]
    tm, Mp = _tile(M, 1024, SUBLANE)
    tk, Kp = _tile(K, 512, LANE)
    tn, Np = _tile(N, 256, LANE)
    xb = x.astype(jnp.bfloat16)
    wb = w.astype(jnp.bfloat16)
    if (Mp, Kp) != (M, K):
        xb = jnp.pad(xb, ((0, Mp - M), (0, Kp - K)))
    if (Kp, Np) != (K, N):
        wb = jnp.pad(wb, ((0, Kp - K), (0, Np - N)))
    b2 = jnp.pad(jnp.reshape(b, (1, N)).astype(jnp.float32), ((0, 0), (0, Np - N)))
    out_bytes = jnp.dtype(out_dtype).itemsize
    out = pl.pallas_call(
        functools.partial(_mm_kernel, act=act),
        grid=(Mp // tm, Np // tn, Kp // tk),
        in_specs=[pl.BlockSpec((tm, tk), lambda i, j, k: (i, k)),
                  pl.BlockSpec((tk, tn), lambda i, j, k: (k, j)),
                  pl.BlockSpec((1, tn), lambda i, j, k: (0, j))],
        out_specs=pl.BlockSpec((tm, tn), lambda i, j, k: (i, j)),
        out_shape=jax.ShapeDtypeStruct((Mp, Np), out_dtype),
        scratch_shapes=[pltpu.VMEM((tm, tn), jnp.float32)],
        compiler_params=pltpu.CompilerParams(
            dimension_semantics=("parallel", "parallel", "arbitrary"),
            vmem_limit_bytes=32 * 1024 * 1024),
        cost_estimate=pl.CostEstimate(
            flops=2 * Mp * Np * Kp, transcendentals=0,
            bytes_accessed=(Mp * Kp + Kp * Np) * 2 + Mp * Np * out_bytes),
    )(xb, wb, b2)
    if (Mp, Np) != (M, N):
        out = out[:M, :N]
    return out


# ---------------------------------------------------------------- fused FiLM + pool + InstanceNorm
def _film_norm_kernel(x_ref, g_ref, b_ref, o_ref, *, pool, n_valid):
    x = x_ref[...].astype(jnp.float32)
    g = g_ref[...].astype(jnp.float32)
    b = b_ref[...].astype(jnp.float32)
    if pool:
        # x: (Rb, H, pool, Wp), g/b: (Rb, pool, Wp) -- pool sits off the lane axis
        y = x * g[:, None, :, :] + b[:, None, :, :]
        pooled = y[:, :, 0, :]
        for j in range(1, pool):
            pooled = jnp.maximum(pooled, y[:, :, j, :])
        y = pooled                                        # (Rb, H, Wp)
    else:
        # x: (Rb, H, Wp), g/b: (Rb, Wp)
        y = x * g[:, None, :] + b[:, None, :]
    inv_n = 1.0 / float(n_valid)
    s1 = jnp.sum(jnp.sum(y, axis=2, keepdims=True), axis=1, keepdims=True)
    s2 = jnp.sum(jnp.sum(y * y, axis=2, keepdims=True), axis=1, keepdims=True)
    mean = s1 * inv_n
    var = jnp.maximum(s2 * inv_n - mean * mean, 0.0)
    o_ref[...] = ((y - mean) * jax.lax.rsqrt(var + 1e-5)).astype(o_ref.dtype)


def film_pool_norm(x, gamma, beta, pool=None):
    """Fused FiLM affine + optional MaxPool2d((1,pool)) + InstanceNorm2d(affine=False).
    x: (B,C,H,W); gamma/beta: (C,W).  bf16 in/out, f32 statistics, lane-dense stores."""
    B, C, H, W = x.shape
    BC = B * C
    Rb = 8
    BCp = _ceil_to(BC, Rb)
    xr = x.reshape(BC, H, W).astype(jnp.bfloat16)
    g = jnp.tile(gamma.astype(jnp.float32), (B, 1))           # (BC, W)
    bt = jnp.tile(beta.astype(jnp.float32), (B, 1))
    if pool is None:
        Wout = W
        Wp = _ceil_to(Wout, LANE)
        xb = jnp.pad(xr, ((0, BCp - BC), (0, 0), (0, Wp - W)))
        gb = jnp.pad(g, ((0, BCp - BC), (0, Wp - W)))
        bb = jnp.pad(bt, ((0, BCp - BC), (0, Wp - W)))
        blk_x, blk_g = (Rb, H, Wp), (Rb, Wp)
        ix, ig = (lambda i: (i, 0, 0)), (lambda i: (i, 0))
    else:
        Wout = W // pool
        Wp = _ceil_to(Wout, LANE)
        xb = xr.reshape(BC, H, Wout, pool).transpose(0, 1, 3, 2)   # (BC,H,pool,Wout)
        gb = g.reshape(BC, Wout, pool).transpose(0, 2, 1)          # (BC,pool,Wout)
        bb = bt.reshape(BC, Wout, pool).transpose(0, 2, 1)
        xb = jnp.pad(xb, ((0, BCp - BC), (0, 0), (0, 0), (0, Wp - Wout)))
        gb = jnp.pad(gb, ((0, BCp - BC), (0, 0), (0, Wp - Wout)))
        bb = jnp.pad(bb, ((0, BCp - BC), (0, 0), (0, Wp - Wout)))
        blk_x, blk_g = (Rb, H, pool, Wp), (Rb, pool, Wp)
        ix, ig = (lambda i: (i, 0, 0, 0)), (lambda i: (i, 0, 0))
    out = pl.pallas_call(
        functools.partial(_film_norm_kernel, pool=pool, n_valid=H * Wout),
        grid=(BCp // Rb,),
        in_specs=[pl.BlockSpec(blk_x, ix),
                  pl.BlockSpec(blk_g, ig),
                  pl.BlockSpec(blk_g, ig)],
        out_specs=pl.BlockSpec((Rb, H, Wp), lambda i: (i, 0, 0)),
        out_shape=jax.ShapeDtypeStruct((BCp, H, Wp), jnp.bfloat16),
        compiler_params=pltpu.CompilerParams(dimension_semantics=("parallel",)),
    )(xb, gb, bb)
    return out[:BC, :, :Wout].reshape(B, C, H, Wout)


# ---------------------------------------------------------------- attention (heads batched per block)
def _attn_kernel(q_ref, k_ref, v_ref, o_ref, *, scale, lk):
    q = q_ref[...]                      # bf16 (Gb, Lq, hdp)
    k = k_ref[...]                      # bf16 (Gb, Lkp, hdp)
    v = v_ref[...]
    s = jnp.einsum("bqd,bkd->bqk", q, k,
                   preferred_element_type=jnp.float32) * scale
    if s.shape[2] != lk:                # mask zero-padded keys out of the softmax
        col = jax.lax.broadcasted_iota(jnp.int32, s.shape, 2)
        s = jnp.where(col < lk, s, -1e30)
    s = s - jnp.max(s, axis=-1, keepdims=True)
    p = jnp.exp(s)
    p = p * pl.reciprocal(jnp.sum(p, axis=-1, keepdims=True), approx=True)
    o_ref[...] = jnp.einsum("bqk,bkd->bqd", p.astype(jnp.bfloat16), v,
                            preferred_element_type=jnp.float32).astype(o_ref.dtype)


def attention(q, k, v, scale):
    """q:(G,Lq,hd), k,v:(G,Lk,hd) -> (G,Lq,hd).  bf16 MXU path, padded hd / Lk."""
    G, Lq, hd = q.shape
    Lk = k.shape[1]
    Gb = 8
    Gp = _ceil_to(G, Gb)
    hdp = _ceil_to(hd, LANE)
    Lkp = _ceil_to(Lk, LANE)

    def pad3(t, g, l, d):
        return jnp.pad(t.astype(jnp.bfloat16),
                       ((0, g - t.shape[0]), (0, l - t.shape[1]), (0, d - t.shape[2])))

    out = pl.pallas_call(
        functools.partial(_attn_kernel, scale=scale, lk=Lk),
        grid=(Gp // Gb,),
        in_specs=[pl.BlockSpec((Gb, Lq, hdp), lambda i: (i, 0, 0)),
                  pl.BlockSpec((Gb, Lkp, hdp), lambda i: (i, 0, 0)),
                  pl.BlockSpec((Gb, Lkp, hdp), lambda i: (i, 0, 0))],
        out_specs=pl.BlockSpec((Gb, Lq, hdp), lambda i: (i, 0, 0)),
        out_shape=jax.ShapeDtypeStruct((Gp, Lq, hdp), jnp.bfloat16),
        compiler_params=pltpu.CompilerParams(dimension_semantics=("parallel",)),
        cost_estimate=pl.CostEstimate(
            flops=4 * Gp * Lq * Lkp * hdp, transcendentals=Gp * Lq * Lkp,
            bytes_accessed=2 * Gp * (2 * Lq * hdp + 2 * Lkp * hdp)),
    )(pad3(q, Gp, Lq, hdp), pad3(k, Gp, Lkp, hdp), pad3(v, Gp, Lkp, hdp))
    return out[:G, :, :hd]


# ---------------------------------------------------------------- LSTM (chunked time axis)
def _lstm_kernel(xp_ref, whh_ref, o_ref, h_sc, c_sc, *, tc, hp):
    @pl.when(pl.program_id(0) == 0)
    def _():
        h_sc[...] = jnp.zeros_like(h_sc)
        c_sc[...] = jnp.zeros_like(c_sc)

    whh = whh_ref[...]                                   # bf16 (Hp, 4Hp)

    def step(t, carry):
        gates = xp_ref[t].astype(jnp.float32) + jnp.dot(
            h_sc[...].astype(jnp.bfloat16), whh,
            preferred_element_type=jnp.float32)          # (N, 4*hp) f32
        i = jax.nn.sigmoid(gates[:, 0 * hp:1 * hp])
        f = jax.nn.sigmoid(gates[:, 1 * hp:2 * hp])
        g = jnp.tanh(gates[:, 2 * hp:3 * hp])
        o = jax.nn.sigmoid(gates[:, 3 * hp:4 * hp])
        c = f * c_sc[...] + i * g
        h = o * jnp.tanh(c)
        c_sc[...] = c
        h_sc[...] = h
        o_ref[t] = h.astype(o_ref.dtype)
        return carry

    jax.lax.fori_loop(0, tc, step, 0, unroll=True)


def _pad_gates(w, h, hp):
    """(X, 4h) gate-major columns -> (X, 4hp) so each gate slice is lane-aligned."""
    x_dim = w.shape[0]
    wg = jnp.pad(w.reshape(x_dim, 4, h), ((0, 0), (0, 0), (0, hp - h)))
    return wg.reshape(x_dim, 4 * hp)


def lstm_layer(x_tnf, lp):
    """One LSTM layer, time-major input (T, N, F) -> (T, N, H)."""
    T, N, F = x_tnf.shape
    H = lp["w_hh"].shape[0]
    Hp = _ceil_to(H, LANE)
    w_ih = _pad_gates(lp["w_ih"], H, Hp)
    w_hh = jnp.pad(_pad_gates(lp["w_hh"], H, Hp), ((0, Hp - H), (0, 0)))
    bias = jnp.pad(lp["b"].reshape(4, H), ((0, 0), (0, Hp - H))).reshape(4 * Hp)
    # Precomputed input gates in bf16 (halves the dominant DMA stream).
    xp = matmul_bias(x_tnf.reshape(T * N, F), w_ih, bias,
                     out_dtype=jnp.bfloat16).reshape(T, N, 4 * Hp)
    tc = min(16, T)
    Tp = _ceil_to(T, tc)
    if Tp != T:
        xp = jnp.pad(xp, ((0, Tp - T), (0, 0), (0, 0)))
    out = pl.pallas_call(
        functools.partial(_lstm_kernel, tc=tc, hp=Hp),
        grid=(Tp // tc,),
        in_specs=[pl.BlockSpec((tc, N, 4 * Hp), lambda t: (t, 0, 0)),
                  pl.BlockSpec((Hp, 4 * Hp), lambda t: (0, 0))],
        out_specs=pl.BlockSpec((tc, N, Hp), lambda t: (t, 0, 0)),
        out_shape=jax.ShapeDtypeStruct((Tp, N, Hp), jnp.bfloat16),
        scratch_shapes=[pltpu.VMEM((N, Hp), jnp.float32),
                        pltpu.VMEM((N, Hp), jnp.float32)],
        compiler_params=pltpu.CompilerParams(
            dimension_semantics=("arbitrary",),
            vmem_limit_bytes=32 * 1024 * 1024),
    )(xp, w_hh.astype(jnp.bfloat16))
    return out[:T, :, :H]


def lstm2(p, x_btf):
    """2-layer unidirectional LSTM, batch_first input (N, T, F)."""
    x = jnp.transpose(x_btf, (1, 0, 2))
    h = lstm_layer(x, p["l0"])
    h = lstm_layer(h, p["l1"])
    return jnp.transpose(h, (1, 0, 2))


# ---------------------------------------------------------------- conv helpers (bf16 im2col glue + Pallas matmul)
def conv2d_same(x, w, b, dilation=(1, 1), act="none"):
    """x: (B,Cin,H,W), w: (Cout,Cin,kh,kw), padding='same'."""
    # TODO(synk): im2col patches still hit HBM; folding taps into the matmul K grid
    #             via manual DMA of shifted windows is future work.
    B, Cin, H, W = x.shape
    Cout, _, kh, kw = w.shape
    dh, dw = dilation
    ph, pw = dh * (kh - 1) // 2, dw * (kw - 1) // 2
    xh = jnp.transpose(x, (0, 2, 3, 1)).astype(jnp.bfloat16)          # NHWC, bf16
    xp = jnp.pad(xh, ((0, 0), (ph, ph), (pw, pw), (0, 0)))
    cols = [xp[:, i * dh:i * dh + H, j * dw:j * dw + W, :]
            for i in range(kh) for j in range(kw)]
    patches = jnp.concatenate(cols, axis=-1)                          # (B,H,W,kh*kw*Cin)
    x2 = patches.reshape(B * H * W, kh * kw * Cin)
    w2 = jnp.transpose(w, (2, 3, 1, 0)).reshape(kh * kw * Cin, Cout)  # (kh,kw,Cin)-major
    y = matmul_bias(x2, w2, b, act=act, out_dtype=jnp.bfloat16)
    return jnp.transpose(y.reshape(B, H, W, Cout), (0, 3, 1, 2))


def conv_film_block(p, x, dilation=(1, 1), pool_last=None):
    # TODO(synk): FilmLayer is undefined in the reference; implemented here as a
    # learned per-(channel, last-spatial-dim) affine modulation.
    x = conv2d_same(x, p["w"], p["b"], dilation=dilation, act="relu")
    return film_pool_norm(x, p["gamma"], p["beta"], pool=pool_last)


def harmonic_dilated_conv(p, x):
    """Sum of 8 [1,3] dilated convs, folded into one tiled Pallas matmul, then ReLU."""
    B, Cin, H, W = x.shape
    Cout = p["ws"][0].shape[0]
    xh = jnp.transpose(x, (0, 2, 3, 1)).astype(jnp.bfloat16)          # (B,H,W,Cin)
    cols = []
    for d in HDC_DILATIONS:
        xp = jnp.pad(xh, ((0, 0), (0, 0), (d, d), (0, 0)))
        for j in range(3):
            cols.append(xp[:, :, j * d:j * d + W, :])
    patches = jnp.concatenate(cols, axis=-1)                          # (B,H,W,nd*3*Cin)
    x2 = patches.reshape(B * H * W, -1)
    w2 = jnp.concatenate(
        [jnp.transpose(w[:, :, 0, :], (2, 1, 0)).reshape(3 * Cin, Cout)
         for w in p["ws"]], axis=0)                                   # (nd*3*Cin, Cout)
    bsum = sum(p["bs"])
    y = matmul_bias(x2, w2, bsum, act="relu", out_dtype=jnp.bfloat16)
    return jnp.transpose(y.reshape(B, H, W, Cout), (0, 3, 1, 2))


# ---------------------------------------------------------------- sub-modules
def _block_diag(mats):
    rows = sum(m.shape[0] for m in mats)
    cols = sum(m.shape[1] for m in mats)
    out = jnp.zeros((rows, cols), jnp.float32)
    r = c = 0
    for m in mats:
        out = out.at[r:r + m.shape[0], c:c + m.shape[1]].set(m)
        r += m.shape[0]
        c += m.shape[1]
    return out


def context_net_multi(ps, c):
    """Run several ContextNets sharing the same input c, fused along the
    feature axis (block-diagonal weights) -> one matmul chain instead of len(ps)."""
    B, T, P, D = c.shape
    M = B * T * P
    n = len(ps)
    feats = c[..., 1:].reshape(M, D - 1).astype(jnp.float32)
    w1 = jnp.concatenate([p["w1"] for p in ps], axis=1)
    b1 = jnp.concatenate([p["b1"] for p in ps], axis=0)
    h = matmul_bias(feats, w1, b1, act="relu")                    # (M, n*16)
    w2 = _block_diag([p["w2"] for p in ps])
    b2 = jnp.concatenate([p["b2"] for p in ps], axis=0)
    h = matmul_bias(h, w2, b2, act="relu")                        # (M, n*16)
    state = c[..., 0].astype(jnp.int32).reshape(M)
    nh = ps[0]["w2"].shape[1]
    parts = []
    for i, p in enumerate(ps):
        emb = p["state_emb"][state]                               # (M, 2) glue gather
        parts.append(jnp.concatenate([emb, h[:, i * nh:(i + 1) * nh]], axis=-1))
    cat = jnp.concatenate(parts, axis=-1)                         # (M, n*18)
    wp = _block_diag([p["wp"] for p in ps])
    bp = jnp.concatenate([p["bp"] for p in ps], axis=0)
    out = matmul_bias(cat, wp, bp)                                # (M, sum(out_dims))
    outs, off = [], 0
    for p in ps:
        od = p["wp"].shape[1]
        outs.append(out[:, off:off + od].reshape(B, T, P, od))
        off += od
    return outs


def mha(p, q_in, kv_in, num_heads=4):
    """nn.MultiheadAttention (batch_first, eval: dropout=identity); K/V proj fused."""
    N, Lq, E = q_in.shape
    Lk = kv_in.shape[1]
    hd = E // num_heads
    q = matmul_bias(q_in.reshape(-1, E), p["wq"], p["bq"])
    wkv = jnp.concatenate([p["wk"], p["wv"]], axis=1)
    bkv = jnp.concatenate([p["bk"], p["bv"]], axis=0)
    kv = matmul_bias(kv_in.reshape(-1, E), wkv, bkv)
    k, v = kv[:, :E], kv[:, E:]

    def split(t, L):
        return t.reshape(N, L, num_heads, hd).transpose(0, 2, 1, 3).reshape(
            N * num_heads, L, hd)

    oh = attention(split(q, Lq), split(k, Lk), split(v, Lk),
                   scale=1.0 / float(np.sqrt(hd)))
    o = oh.reshape(N, num_heads, Lq, hd).transpose(0, 2, 1, 3).reshape(N * Lq, E)
    return matmul_bias(o, p["wo"], p["bo"]).reshape(N, Lq, E)


def front_block(fp, x):
    x = conv_film_block(fp[0], x)
    x = conv_film_block(fp[1], x)
    x = conv_film_block(fp[2], x, pool_last=5)
    return x                                           # (B, n_unit, T, 99)


def cross_attention(p, x, c):
    """x: (B,C,T,99), c: (B,T,88,C) -> (B,C,T,88)."""
    B, C, T, _ = x.shape
    C2 = c.shape[3]
    c = c + sinusoids(N_PITCH, C2)
    x = jnp.transpose(x, (0, 2, 3, 1)) + sinusoids(N_KEY, C)
    x = x.reshape(B * T, N_KEY, C)
    c = c.reshape(B * T, N_PITCH, C2)
    attn = mha(p["mha"], c, x)
    return jnp.transpose(attn.reshape(B, T, N_PITCH, C2), (0, 3, 1, 2))


def middle_block(p, x, c):
    """x: (B,C,T,88), c: (B,T,88,C) -> (B,C,T,88)."""
    B, C, T, _ = x.shape
    x = harmonic_dilated_conv(p["hdc0"], x)
    x = harmonic_dilated_conv(p["hdc1"], x)
    xr = jnp.transpose(x, (0, 2, 3, 1)).reshape(B * T, N_PITCH, C)
    cr = c.reshape(B * T, N_PITCH, -1)
    xr = xr + sinusoids(N_PITCH, C)
    cr = cr + sinusoids(N_PITCH, C)
    attn = mha(p["mha"], cr, xr)
    x = jnp.transpose(attn.reshape(B, T, N_PITCH, -1), (0, 3, 1, 2))
    x = harmonic_dilated_conv(p["hdc2"], x)
    for blk in p["block"]:
        x = conv_film_block(blk, x)                    # kernel [3,1], n_f=88
    return x


def frontend(fbs, audio, T):
    # TODO(synk): MidiSpec is undefined in the reference; stand-in = framed audio
    # projected onto 3 fixed cosine filterbanks (low/mid/high n_fft) + log1p(|.|).
    # All 3 filterbanks are fused into one matmul (K=512, N=3*495) with the
    # log1p(|.|) folded into the kernel epilogue.
    B = audio.shape[0]
    frames = audio.reshape(B * T, HOP)
    fb = jnp.concatenate(fbs, axis=1)                  # (HOP, 3*N_FREQ)
    spec = matmul_bias(frames, fb, jnp.zeros((fb.shape[1],), jnp.float32),
                       act="log1p_abs", out_dtype=jnp.bfloat16)
    spec = spec.reshape(B, T, 3, N_FREQ).transpose(0, 2, 3, 1)   # (B,3,495,T)
    return spec


# ---------------------------------------------------------------- full forward (infer=False branch)
def forward_mask(params, audio, c_mask, T):
    spec = frontend(params["fbs"], audio, T)           # (B,3,495,T)
    x_in = jnp.transpose(spec, (0, 1, 3, 2))           # (B,3,T,495)
    # Fuse the four c_mask context nets (main/vel x ctx1/ctx2) into one chain.
    c1m, c2m, c1v, c2v = context_net_multi(
        [params["main"]["ctx1"], params["main"]["ctx2"],
         params["vel"]["ctx1"], params["vel"]["ctx2"]], c_mask)
    outs = []
    for br, c1, c2 in (("main", c1m, c2m), ("vel", c1v, c2v)):
        p = params[br]
        x = front_block(p["front"], x_in)              # (B,n_unit,T,99)
        x = cross_attention(p["xattn"], x, c1)         # (B,n_unit,T,88)
        outs.append(middle_block(p["mid"], x, c2))     # (B,n_unit,T,88)
    return outs[0], outs[1]


def trans_model2_forward(params, audio, c_mask, c_target, T):
    x, x_vel = forward_mask(params, audio, c_mask, T)
    B = x.shape[0]
    cfw_m, cfw_v = context_net_multi(
        [params["main"]["ctx3"], params["vel"]["ctx3"]], c_target)   # (B,T,88,4) each
    results = []
    for br, feat, c_fw in (("main", x, cfw_m), ("vel", x_vel, cfw_v)):
        p = params[br]
        z = jnp.concatenate([feat, jnp.transpose(c_fw, (0, 3, 1, 2))], axis=1)
        z = jnp.transpose(z, (0, 3, 2, 1)).reshape(B * N_PITCH, T, -1)   # (B*88,T,C+4)
        h = lstm2(p["lstm"], z)                                          # (B*88,T,H)
        h = jnp.transpose(h.reshape(B, N_PITCH, T, -1), (0, 2, 1, 3))    # (B,T,88,H)
        o = matmul_bias(h.reshape(-1, h.shape[-1]), p["out_w"], p["out_b"],
                        out_dtype=jnp.float32)
        results.append(o.reshape(B, T, N_PITCH, -1))
    return results[0], results[1]    # (B,T,88,5), (B,T,88,128)


# ---------------------------------------------------------------- deterministic parameter init
class ParamInit:
    def __init__(self, seed=1234):
        self.key = jax.random.PRNGKey(seed)
        self.n = 0

    def _next(self):
        self.n += 1
        return jax.random.fold_in(self.key, self.n)

    def w(self, shape, fan_in):
        s = 1.0 / np.sqrt(max(int(fan_in), 1))
        return jax.random.uniform(self._next(), shape, jnp.float32, -s, s)


def init_cfb(pi, cin, cout, kh, kw, n_f):
    fan = cin * kh * kw
    return dict(w=pi.w((cout, cin, kh, kw), fan),
                b=pi.w((cout,), fan),
                gamma=1.0 + 0.1 * pi.w((cout, n_f), n_f),
                beta=0.1 * pi.w((cout, n_f), n_f))


def init_ctx(pi, bw, out_dim):
    in_dim = 4 if bw else 2
    return dict(w1=pi.w((in_dim, 16), in_dim), b1=pi.w((16,), in_dim),
                w2=pi.w((16, 16), 16), b2=pi.w((16,), 16),
                state_emb=pi.w((6, 2), 1),
                wp=pi.w((18, out_dim), 18), bp=pi.w((out_dim,), 18))


def init_mha(pi, E):
    return dict(mha=dict(
        wq=pi.w((E, E), E), bq=pi.w((E,), E),
        wk=pi.w((E, E), E), bk=pi.w((E,), E),
        wv=pi.w((E, E), E), bv=pi.w((E,), E),
        wo=pi.w((E, E), E), bo=pi.w((E,), E)))


def init_hdc(pi, cin, cout):
    return dict(ws=[pi.w((cout, cin, 1, 3), cin * 3) for _ in HDC_DILATIONS],
                bs=[pi.w((cout,), cin * 3) for _ in HDC_DILATIONS])


def init_lstm_layer(pi, in_dim, H):
    return dict(w_ih=pi.w((in_dim, 4 * H), in_dim),
                w_hh=pi.w((H, 4 * H), H),
                b=pi.w((4 * H,), H))


def init_branch(pi, cnn_unit, n_unit, lstm_unit, out_dim):
    return dict(
        front=[init_cfb(pi, 3, cnn_unit, 3, 3, N_FREQ),
               init_cfb(pi, cnn_unit, cnn_unit, 3, 3, N_FREQ),
               init_cfb(pi, cnn_unit, n_unit, 3, 3, N_FREQ)],
        ctx1=init_ctx(pi, True, n_unit),
        xattn=init_mha(pi, n_unit),
        ctx2=init_ctx(pi, True, n_unit),
        mid=dict(hdc0=init_hdc(pi, n_unit, n_unit),
                 hdc1=init_hdc(pi, n_unit, n_unit),
                 **init_mha(pi, n_unit),
                 hdc2=init_hdc(pi, n_unit, n_unit),
                 block=[init_cfb(pi, n_unit, n_unit, 3, 1, N_PITCH) for _ in range(4)]),
        ctx3=init_ctx(pi, False, 4),
        lstm=dict(l0=init_lstm_layer(pi, n_unit + 4, lstm_unit),
                  l1=init_lstm_layer(pi, lstm_unit, lstm_unit)),
        out_w=pi.w((lstm_unit, out_dim), lstm_unit),
        out_b=pi.w((out_dim,), lstm_unit))


def make_filterbank(n_fft, n_bins=N_FREQ):
    t = np.arange(HOP, dtype=np.float64)[:, None]
    freqs = (np.arange(n_bins, dtype=np.float64)[None, :] + 1.0) * (2 * np.pi / n_fft)
    return jnp.asarray(np.cos(t * freqs) / np.sqrt(HOP), jnp.float32)


def init_params(cnn_unit, n_unit, lstm_unit, seed=1234):
    pi = ParamInit(seed)
    return dict(
        fbs=[make_filterbank(1024), make_filterbank(4096), make_filterbank(8192)],
        main=init_branch(pi, cnn_unit, n_unit, lstm_unit, 5),
        vel=init_branch(pi, cnn_unit, n_unit, lstm_unit, 128))


# ---------------------------------------------------------------- main
if __name__ == "__main__":
    B, T = 1, 4
    cnn_unit, n_unit, lstm_unit = 8, 8, 16   # small config (n_unit divisible by 4 heads)

    params = init_params(cnn_unit, n_unit, lstm_unit)

    key = jax.random.PRNGKey(0)
    k1, k2, k3, k4, k5 = jax.random.split(key, 5)
    audio = jax.random.normal(k1, (B, T * HOP), jnp.float32)
    state = jax.random.randint(k2, (B, T, N_PITCH, 1), 0, 6).astype(jnp.float32)
    feats = jax.random.uniform(k3, (B, T, N_PITCH, 4), jnp.float32)
    c_mask = jnp.concatenate([state, feats], axis=-1)            # (B,T,88,5)  bw=True
    state_t = jax.random.randint(k4, (B, T, N_PITCH, 1), 0, 6).astype(jnp.float32)
    feats_t = jax.random.uniform(k5, (B, T, N_PITCH, 2), jnp.float32)
    c_target = jnp.concatenate([state_t, feats_t], axis=-1)      # (B,T,88,3)  bw=False

    out, vel_out = trans_model2_forward(params, audio, c_mask, c_target, T)
    out, vel_out = jax.block_until_ready((out, vel_out))

    assert out.shape == (B, T, N_PITCH, 5), out.shape
    assert vel_out.shape == (B, T, N_PITCH, 128), vel_out.shape
    assert np.all(np.isfinite(np.asarray(out)))
    assert np.all(np.isfinite(np.asarray(vel_out)))
    print("KERNEL_OK")
</pallas_src>

<mosaic_0001>
module attributes {stable_mosaic.version = 11 : i64} {
  func.func @_mm_kernel(%arg0: i32, %arg1: i32, %arg2: i32, %arg3: memref<8x512xbf16, #tpu.memory_space<vmem>>, %arg4: memref<512x256xbf16, #tpu.memory_space<vmem>>, %arg5: memref<1x256xf32, #tpu.memory_space<vmem>>, %arg6: memref<8x256xbf16, #tpu.memory_space<vmem>>, %arg7: memref<8x256xf32, #tpu.memory_space<vmem>>) attributes {dimension_semantics = [#tpu.dimension_semantics<parallel>, #tpu.dimension_semantics<parallel>, #tpu.dimension_semantics<arbitrary>], iteration_bounds = array<i64: 1, 6, 1>, scalar_prefetch = 0 : i64, scratch_operands = 1 : i64, tpu.core_type = #tpu.core_type<tc>, window_params = [{transform_indices = @transform_0, window_bounds = array<i64: 8, 512>}, {transform_indices = @transform_1, window_bounds = array<i64: 512, 256>}, {transform_indices = @transform_2, window_bounds = array<i64: 1, 256>}, {transform_indices = @transform_3, window_bounds = array<i64: 8, 256>}]} {
    %c0_i32 = arith.constant 0 : i32
    %0 = arith.cmpi eq, %arg2, %c0_i32 : i32
    %1 = arith.extui %0 : i1 to i32
    %c0_i32_0 = arith.constant 0 : i32
    %2 = arith.cmpi ne, %1, %c0_i32_0 : i32
    scf.if %2 {
      %c0_10 = arith.constant 0 : index
      %c0_11 = arith.constant 0 : index
      %12 = vector.load %arg5[%c0_10, %c0_11] : memref<1x256xf32, #tpu.memory_space<vmem>>, vector<1x256xf32>
      %13 = vector.shape_cast %12 : vector<1x256xf32> to vector<1x256xf32>
      %14 = vector.broadcast %13 : vector<1x256xf32> to vector<8x256xf32>
      %c0_12 = arith.constant 0 : index
      %c0_13 = arith.constant 0 : index
      %15 = vector.load %arg7[%c0_12, %c0_13] : memref<8x256xf32, #tpu.memory_space<vmem>>, vector<8x256xf32>
      tpu.vector_store %arg7[%c0_12, %c0_13], %14 {strides = array<i32>} : memref<8x256xf32, #tpu.memory_space<vmem>>, vector<8x256xf32>,
    } else {
    }
    %c0 = arith.constant 0 : index
    %c0_1 = arith.constant 0 : index
    %3 = vector.load %arg7[%c0, %c0_1] : memref<8x256xf32, #tpu.memory_space<vmem>>, vector<8x256xf32>
    %c0_2 = arith.constant 0 : index
    %c0_3 = arith.constant 0 : index
    %4 = vector.load %arg3[%c0_2, %c0_3] : memref<8x512xbf16, #tpu.memory_space<vmem>>, vector<8x512xbf16>
    %c0_4 = arith.constant 0 : index
    %c0_5 = arith.constant 0 : index
    %5 = vector.load %arg4[%c0_4, %c0_5] : memref<512x256xbf16, #tpu.memory_space<vmem>>, vector<512x256xbf16>
    %cst = arith.constant dense<0.000000e+00> : vector<8x256xf32>
    %6 = tpu.matmul %4, %5, %cst {dimension_numbers = #tpu.dot_dimension_numbers<[1], [0], [0], [1], [0, 0, 1, 1], [], []>} : vector<8x512xbf16>, vector<512x256xbf16>, vector<8x256xf32> -> vector<8x256xf32>
    %7 = arith.addf %3, %6 : vector<8x256xf32>
    %c0_6 = arith.constant 0 : index
    %c0_7 = arith.constant 0 : index
    %8 = vector.load %arg7[%c0_6, %c0_7] : memref<8x256xf32, #tpu.memory_space<vmem>>, vector<8x256xf32>
    tpu.vector_store %arg7[%c0_6, %c0_7], %7 {strides = array<i32>} : memref<8x256xf32, #tpu.memory_space<vmem>>, vector<8x256xf32>,
    %c0_i32_8 = arith.constant 0 : i32
    %9 = arith.cmpi eq, %arg2, %c0_i32_8 : i32
    %10 = arith.extui %9 : i1 to i32
    %c0_i32_9 = arith.constant 0 : i32
    %11 = arith.cmpi ne, %10, %c0_i32_9 : i32
    scf.if %11 {
      %c0_10 = arith.constant 0 : index
      %c0_11 = arith.constant 0 : index
      %12 = vector.load %arg7[%c0_10, %c0_11] : memref<8x256xf32, #tpu.memory_space<vmem>>, vector<8x256xf32>
      %13 = math.absf %12 : vector<8x256xf32>
      %cst_12 = arith.constant 1.000000e+00 : f32
      %14 = vector.broadcast %cst_12 : f32 to vector<8x256xf32>
      %15 = arith.addf %13, %14 : vector<8x256xf32>
      %16 = math.log %15 : vector<8x256xf32>
      %17 = arith.truncf %16 : vector<8x256xf32> to vector<8x256xbf16>
      %c0_13 = arith.constant 0 : index
      %c0_14 = arith.constant 0 : index
      %18 = vector.load %arg6[%c0_13, %c0_14] : memref<8x256xbf16, #tpu.memory_space<vmem>>, vector<8x256xbf16>
      tpu.vector_store %arg6[%c0_13, %c0_14], %17 {strides = array<i32>} : memref<8x256xbf16, #tpu.memory_space<vmem>>, vector<8x256xbf16>,
    } else {
    }
    return
  }
  func.func @transform_0(%arg0: i32, %arg1: i32, %arg2: i32) -> (i32, i32) {
    %c0_i32 = arith.constant 0 : i32
    return %arg0, %arg2 : i32, i32
  }
  func.func @transform_1(%arg0: i32, %arg1: i32, %arg2: i32) -> (i32, i32) {
    %c0_i32 = arith.constant 0 : i32
    return %arg2, %arg1 : i32, i32
  }
  func.func @transform_2(%arg0: i32, %arg1: i32, %arg2: i32) -> (i32, i32) {
    %c0_i32 = arith.constant 0 : i32
    %c0_i32_0 = arith.constant 0 : i32
    return %c0_i32, %arg1 : i32, i32
  }
  func.func @transform_3(%arg0: i32, %arg1: i32, %arg2: i32) -> (i32, i32) {
    %c0_i32 = arith.constant 0 : i32
    return %arg0, %arg1 : i32, i32
  }
}

</mosaic_0001>

<llo_original>
// kernel: tpu_custom_call.1
$region0: #{tpu_custom_call.1}
  #allocation0 [shape = 'u32[]', space=smem, size = 0x4, offset = 0x4, fixed_abs, tag = 'smem constant byte address 0x4 - core index']
  #allocation1 [shape = 'u32[144,128]{1,0:T(1,128)}', space=vmem, size = 0x12000, scoped, tag = 'internal scratch']
  #allocation2 [shape = 'f32[8,256]{1,0:T(8,128)}', space=vmem, size = 0x2000, scoped, tag = 'scratch operand']
  %s0 = inlined_call_operand.hbm [shape: bf16[8,512], index: 0, kind: input, shape index: {}]
  %s1 = inlined_call_operand.hbm [shape: bf16[512,1536], index: 1, kind: input, shape index: {}]
  %s2 = inlined_call_operand.hbm [shape: f32[1,1536], index: 2, kind: input, shape index: {}]
  %s3 = inlined_call_operand.hbm [shape: bf16[8,1536], index: 3, kind: output, shape index: {}]
  %s4 = sld [smem:[#allocation0]]
  $region65: #{tpu_custom_call.1} parent=0
    _
  %s6 = ssub.s32 1, %s4
  %s7 = scalar_select 0, %s6, %s4
  $region1: #{tpu_custom_call.1} parent=0
    #allocation3 [shape = 'u8[8192]{0}', space=vmem, size = 0x2000, scoped, tag = 'input window, operand 0, single buffered']
    #allocation4 [shape = 's32[2]{0}', space=sflag, size = 0x8, scoped, tag = 'scoped memory for tpu_custom_call.1']
    #allocation5 [shape = 's32[2]{0}', space=sflag, size = 0x8, scoped, tag = 'scoped memory for tpu_custom_call.1']
    #allocation6 [shape = 'u8[524288]{0}', space=vmem, size = 0x80000, scoped, tag = 'input window, operand 1']
    #allocation7 [shape = 's32[2]{0}', space=sflag, size = 0x8, scoped, tag = 'scoped memory for tpu_custom_call.1']
    #allocation8 [shape = 'u8[2048]{0}', space=vmem, size = 0x800, scoped, tag = 'input window, operand 2']
    #allocation9 [shape = 'u8[8192]{0}', space=vmem, size = 0x2000, scoped, tag = 'output window, operand 0']
    %8 = vsyncpa [#allocation4], 0
    %9 = vsyncpa [#allocation7], 0
    %s10 = scalar_lea.sflag [#allocation7], 1
    %11 = vsyncpa %s10, 0
    %12 = vsyncpa [#allocation5], 0
    %s13 = scalar_lea.sflag [#allocation5], 1
    %14 = vsyncpa %s13, 0
    loop: start=0, step=1, limit=8
    $region2: #{tpu_custom_call.1} parent=1 // loop_pre_header
      _
    $region3: #{tpu_custom_call.1} parent=1 // loop_header
      %s16 = sphi 0, %s20
      %p17 = scmp.ge.s32.totalorder %s16, 8
      %s23 = sphi 0, %s42
      %s24 = sphi 0, %s38
      %s25 = sphi 0, %s34
      %s26 = sphi 0, %s23
      %s27 = sphi 0, %s24
      %s28 = sphi 0, %s25
      %s29 = sphi 0, %s26
      %s30 = sphi 0, %s27
      %s31 = sphi 0, %s28
      %s47 = sphi 0, %s49
      %s50 = sphi 0, %s47
      %s51 = sphi 0, %s50
      %s67 = sphi 0, %s51
      %s75 = sphi 0, %s77
      %s78 = sphi 0, %s75
      %s79 = sphi 0, %s78
      %s95 = sphi 0, %s79
      %s101 = sphi 0, %s103
      %s104 = sphi 0, %s101
      %s105 = sphi 0, %s104
      %s121 = sphi 0, %s105
      %s129 = sphi 0, %s131
      %s132 = sphi 0, %s129
      %s133 = sphi 0, %s132
      %s149 = sphi 0, %s133
    $region4: #{tpu_custom_call.1} parent=1 // loop_header_branch
      %19 = sbr.rel (%p17) target = $region8
    $region5: #{tpu_custom_call.1} parent=1 // loop_body
      %s21 = ssub.s32 %s16, 1
      %s22 = ssub.s32 %s16, 2
      %s32 = sadd.s32 1, %s25
      %p33 = scmp.ge.s32.totalorder %s32, 1
      %s34 = scalar_select %p33, 0, %s32
      %s35 = sadd.s32 1, %s24
      %s36 = scalar_select %p33, %s35, %s24
      %p37 = scmp.ge.s32.totalorder %s36, 6
      %s38 = scalar_select %p37, 0, %s36
      %s39 = sadd.s32 1, %s23
      %s40 = scalar_select %p37, %s39, %s23
      %p41 = scmp.ge.s32.totalorder %s40, 1
      %s42 = scalar_select %p41, 0, %s40
      %s43 = ssub.s32 %s23, %s42
      %s44 = ssub.s32 %s25, %s34
      %s45 = sor.u32 %s43, %s44
      %p46 = scmp.eq.s32.totalorder %s45, 0
      %s48 = sadd.s32 %s47, 1
      %s49 = scalar_select %p46, %s47, %s48
      %p52 = pneg %p46
      %p53 = scmp.eq.s32.totalorder %s16, 5
      %p54 = por %p52, %p53
      %p55 = scmp.ne.s32.totalorder %s47, %s50
      %p56 = scmp.eq.s32.totalorder %s16, 0
      %p57 = por %p55, %p56
      %p58 = scmp.ne.s32.totalorder %s47, %s50
      %p59 = scmp.eq.s32.totalorder %s21, 5
      %p60 = por %p58, %p59
      %p61 = scmp.ne.s32.totalorder %s50, %s51
      %p62 = scmp.eq.s32.totalorder %s21, 0
      %p63 = por %p61, %p62
      %p64 = scmp.ne.s32.totalorder %s50, %s51
      %p65 = scmp.eq.s32.totalorder %s22, 5
      %p66 = por %p64, %p65
      %p68 = scmp.ne.s32.totalorder %s51, %s67
      %p69 = scmp.eq.s32.totalorder %s22, 0
      %p70 = por %p68, %p69
      %s71 = ssub.s32 %s25, %s34
      %s72 = ssub.s32 %s24, %s38
      %s73 = sor.u32 %s71, %s72
      %p74 = scmp.eq.s32.totalorder %s73, 0
      %s76 = sadd.s32 %s75, 1
      %s77 = scalar_select %p74, %s75, %s76
      %p80 = pneg %p74
      %p81 = scmp.eq.s32.totalorder %s16, 5
      %p82 = por %p80, %p81
      %p83 = scmp.ne.s32.totalorder %s75, %s78
      %p84 = scmp.eq.s32.totalorder %s16, 0
      %p85 = por %p83, %p84
      %p86 = scmp.ne.s32.totalorder %s75, %s78
      %p87 = scmp.eq.s32.totalorder %s21, 5
      %p88 = por %p86, %p87
      %p89 = scmp.ne.s32.totalorder %s78, %s79
      %p90 = scmp.eq.s32.totalorder %s21, 0
      %p91 = por %p89, %p90
      %p92 = scmp.ne.s32.totalorder %s78, %s79
      %p93 = scmp.eq.s32.totalorder %s22, 5
      %p94 = por %p92, %p93
      %p96 = scmp.ne.s32.totalorder %s79, %s95
      %p97 = scmp.eq.s32.totalorder %s22, 0
      %p98 = por %p96, %p97
      %s99 = ssub.s32 %s24, %s38
      %p100 = scmp.eq.s32.totalorder %s99, 0
      %s102 = sadd.s32 %s101, 1
      %s103 = scalar_select %p100, %s101, %s102
      %p106 = pneg %p100
      %p107 = scmp.eq.s32.totalorder %s16, 5
      %p108 = por %p106, %p107
      %p109 = scmp.ne.s32.totalorder %s101, %s104
      %p110 = scmp.eq.s32.totalorder %s16, 0
      %p111 = por %p109, %p110
      %p112 = scmp.ne.s32.totalorder %s101, %s104
      %p113 = scmp.eq.s32.totalorder %s21, 5
      %p114 = por %p112, %p113
      %p115 = scmp.ne.s32.totalorder %s104, %s105
      %p116 = scmp.eq.s32.totalorder %s21, 0
      %p117 = por %p115, %p116
      %p118 = scmp.ne.s32.totalorder %s104, %s105
      %p119 = scmp.eq.s32.totalorder %s22, 5
      %p120 = por %p118, %p119
      %p122 = scmp.ne.s32.totalorder %s105, %s121
      %p123 = scmp.eq.s32.totalorder %s22, 0
      %p124 = por %p122, %p123
      %s125 = ssub.s32 %s23, %s42
      %s126 = ssub.s32 %s24, %s38
      %s127 = sor.u32 %s125, %s126
      %p128 = scmp.eq.s32.totalorder %s127, 0
      %s130 = sadd.s32 %s129, 1
      %s131 = scalar_select %p128, %s129, %s130
      %p134 = pneg %p128
      %p135 = scmp.eq.s32.totalorder %s16, 5
      %p136 = por %p134, %p135
      %p137 = scmp.ne.s32.totalorder %s129, %s132
      %p138 = scmp.eq.s32.totalorder %s16, 0
      %p139 = por %p137, %p138
      %p140 = scmp.ne.s32.totalorder %s129, %s132
      %p141 = scmp.eq.s32.totalorder %s21, 5
      %p142 = por %p140, %p141
      %p143 = scmp.ne.s32.totalorder %s132, %s133
      %p144 = scmp.eq.s32.totalorder %s21, 0
      %p145 = por %p143, %p144
      %p146 = scmp.ne.s32.totalorder %s132, %s133
      %p147 = scmp.eq.s32.totalorder %s22, 5
      %p148 = por %p146, %p147
      %p150 = scmp.ne.s32.totalorder %s133, %s149
      %p151 = scmp.eq.s32.totalorder %s22, 0
      %p152 = por %p150, %p151
      %p153 = scmp.le.s32.totalorder 1, %s16
      %p154 = scmp.lt.s32.totalorder %s16, 7
      %p155 = pnand %p153, %p154
      %p156 = pneg %p155
      // Predicated region
      $region9: #{tpu_custom_call.1} parent=5 // pred_check
        _
      $region10: #{tpu_custom_call.1} parent=5 // pred_check_branch
        %158 = sbr.rel (%p155) target = $region12
      $region11: #{tpu_custom_call.1} parent=5 // pred_region
        %s159 = ssub.s32 %s16, 1
        // Predicated region
        $region13: #{tpu_custom_call.1} parent=11 // pred_check
          %p160 = pneg %p63
        $region14: #{tpu_custom_call.1} parent=11 // pred_check_branch
          %162 = sbr.rel (%p160) target = $region16
        $region15: #{tpu_custom_call.1} parent=11 // pred_region
          %s163 = smul.u32 4, %s28
          %s165 = ssub.s32 256, 256
          %166 = vsyncadd [#allocation4], %s165
          %s167 = smul.addr %s26, 4
          %s168 = sadd.s32 %s163, %s167
          %s169 = smul.addr %s168, 64
          %s170 = scalar_lea.hbm %s0, %s169
          %s172 = sshll.u32 [#allocation3], 4
          %s173 = int_to_ptr.vmem [resolvable:$true] %s172
          %175 = dma.hbm_to_vmem [thread:$0]  %s170, 256, %s173, [#allocation4]
        $region16: #{tpu_custom_call.1} parent=11 // pred_fallthru
          _
      $region12: #{tpu_custom_call.1} parent=5 // pred_fallthru
        _
      %p176 = scmp.lt.s32.totalorder %s16, 6
      // Predicated region
      $region17: #{tpu_custom_call.1} parent=5 // pred_check
        %p177 = pneg %p176
      $region18: #{tpu_custom_call.1} parent=5 // pred_check_branch
        %179 = sbr.rel (%p177) target = $region20
      $region19: #{tpu_custom_call.1} parent=5 // pred_region
        // Predicated region
        $region21: #{tpu_custom_call.1} parent=19 // pred_check
          %p180 = pneg %p85
        $region22: #{tpu_custom_call.1} parent=19 // pred_check_branch
          %182 = sbr.rel (%p180) target = $region24
        $region23: #{tpu_custom_call.1} parent=19 // pred_region
          %s183 = sand.u32 %s16, 1
          %s184 = scalar_lea.sflag [#allocation7], %s183
          %s185 = sand.u32 %s75, 1
          %s186 = smul.addr %s185, 512
          %s187 = scalar_lea.vmem [#allocation6], %s186
          %s188 = smul.u32 64, %s25
          %s189 = smul.u32 2, %s24
          %s191 = ssub.s32 8192, 8192
          %192 = vsyncadd %s184, %s191
          %s193 = smul.addr %s188, 12
          %s194 = sadd.s32 %s189, %s193
          %s195 = smul.addr %s194, 64
          %s196 = scalar_lea.hbm %s1, %s195
          %s197 = sshll.u32 %s187, 4
          %s198 = int_to_ptr.vmem [resolvable:$true] %s197
          %203 = dma.hbm_to_vmem [thread:$0]  %s196, 8192, %s198, %s184, 768, 128, 8
        $region24: #{tpu_custom_call.1} parent=19 // pred_fallthru
          _
        // Predicated region
        $region25: #{tpu_custom_call.1} parent=19 // pred_check
          %p204 = pneg %p111
        $region26: #{tpu_custom_call.1} parent=19 // pred_check_branch
          %206 = sbr.rel (%p204) target = $region28
        $region27: #{tpu_custom_call.1} parent=19 // pred_region
          %s207 = sand.u32 %s16, 1
          %s208 = scalar_lea.sflag [#allocation7], %s207
          %s209 = sand.u32 %s101, 1
          %s210 = smul.addr %s209, 2
          %s211 = scalar_lea.vmem [#allocation8], %s210
          %s212 = smul.u32 2, %s24
          %s214 = ssub.s32 32, 32
          %215 = vsyncadd %s208, %s214
          %s216 = smul.addr %s212, 16
          %s217 = scalar_lea.hbm %s2, %s216
          %s219 = sshll.u32 %s211, 4
          %s220 = int_to_ptr.vmem [resolvable:$true] %s219
          %222 = dma.hbm_to_vmem [thread:$0]  %s217, 32, %s220, %s208
        $region28: #{tpu_custom_call.1} parent=19 // pred_fallthru
          _
      $region20: #{tpu_custom_call.1} parent=5 // pred_fallthru
        _
      %p223 = scmp.le.s32.totalorder 1, %s16
      %p224 = scmp.lt.s32.totalorder %s16, 7
      %p225 = pnand %p223, %p224
      %p226 = pneg %p225
      // Predicated region
      $region29: #{tpu_custom_call.1} parent=5 // pred_check
        _
      $region30: #{tpu_custom_call.1} parent=5 // pred_check_branch
        %228 = sbr.rel (%p225) target = $region32
      $region31: #{tpu_custom_call.1} parent=5 // pred_region
        %s229 = ssub.s32 %s16, 1
        // Predicated region
        $region33: #{tpu_custom_call.1} parent=31 // pred_check
          %p230 = pneg %p63
        $region34: #{tpu_custom_call.1} parent=31 // pred_check_branch
          %232 = sbr.rel (%p230) target = $region36
        $region35: #{tpu_custom_call.1} parent=31 // pred_region
          %233 = dma.done [#allocation4], 256
        $region36: #{tpu_custom_call.1} parent=31 // pred_fallthru
          _
        %s234 = sand.u32 %s21, 1
        %s235 = scalar_lea.sflag [#allocation7], %s234
        %s236 = sand.u32 %s78, 1
        %s237 = smul.addr %s236, 512
        %s238 = scalar_lea.vmem [#allocation6], %s237
        // Predicated region
        $region37: #{tpu_custom_call.1} parent=31 // pred_check
          %p239 = pneg %p91
        $region38: #{tpu_custom_call.1} parent=31 // pred_check_branch
          %241 = sbr.rel (%p239) target = $region40
        $region39: #{tpu_custom_call.1} parent=31 // pred_region
          %242 = dma.done %s235, 8192
        $region40: #{tpu_custom_call.1} parent=31 // pred_fallthru
          _
        %s243 = sand.u32 %s21, 1
        %s244 = scalar_lea.sflag [#allocation7], %s243
        %s245 = sand.u32 %s104, 1
        %s246 = smul.addr %s245, 2
        %s247 = scalar_lea.vmem [#allocation8], %s246
        // Predicated region
        $region41: #{tpu_custom_call.1} parent=31 // pred_check
          %p248 = pneg %p117
        $region42: #{tpu_custom_call.1} parent=31 // pred_check_branch
          %250 = sbr.rel (%p248) target = $region44
        $region43: #{tpu_custom_call.1} parent=31 // pred_region
          %251 = dma.done %s244, 32
        $region44: #{tpu_custom_call.1} parent=31 // pred_fallthru
          _
        %p252 = pneg %p63
        %p253 = pneg %p60
        %s254 = sand.u32 %s21, 1
        %s255 = scalar_lea.sflag [#allocation7], %s254
        %s256 = sand.u32 %s78, 1
        %s257 = smul.addr %s256, 512
        %s258 = scalar_lea.vmem [#allocation6], %s257
        %p259 = pneg %p91
        %p260 = pneg %p88
        %s261 = sand.u32 %s21, 1
        %s262 = scalar_lea.sflag [#allocation7], %s261
        %s263 = sand.u32 %s104, 1
        %s264 = smul.addr %s263, 2
        %s265 = scalar_lea.vmem [#allocation8], %s264
        %p266 = pneg %p117
        %p267 = pneg %p114
        %p268 = pneg %p145
        %p269 = pneg %p142
        %s270 = sand.u32 %s132, 1
        %s271 = scalar_lea.sflag [#allocation5], %s270
        %s272 = sand.u32 %s132, 1
        %s273 = smul.addr %s272, 8
        %s274 = scalar_lea.vmem [#allocation9], %s273
        %s275 = smul.u32 4, %s28
        %s276 = smul.u32 64, %s28
        %s277 = smul.u32 2, %s27
        %s278 = smul.u32 2, %s27
        %s279 = smul.u32 2, %s27
        %p280 = scmp.eq.s32.totalorder %s28, 0
        // Predicated region
        $region45: #{tpu_custom_call.1} parent=31 // pred_check
          %p281 = pneg %p280
        $region46: #{tpu_custom_call.1} parent=31 // pred_check_branch
          %283 = sbr.rel (%p281) target = $region48
        $region47: #{tpu_custom_call.1} parent=31 // pred_region
          %v284 = vld [vmem:[%s247] sm:$0x3]
          %v286 = vlaneseq
          %v287 = vshrl.u32 %v286, 7
          %v288 = vsub.s32 0, %v287
          %v289 = vrot.slane %v284, %v288
          %v290 = vlaneseq
          %v291 = vshrl.u32 %v290, 7
          %v292 = vsub.s32 1, %v291
          %v293 = vrot.slane %v284, %v292
          %296 = vst [vmem:[#allocation2] sm:$0xff] %v289
          %297 = vst [vmem:[#allocation2 + $0x8] sm:$0xff] %v293
        $region48: #{tpu_custom_call.1} parent=31 // pred_fallthru
          _
        %v298 = vld [vmem:[#allocation2] sm:$0xff]
        %v299 = vld [vmem:[#allocation2 + $0x8] sm:$0xff]
        %v300 = vld [vmem:[#allocation3] sm:$0xff]
        %v301 = vld [vmem:[#allocation3 + $0x8] sm:$0xff]
        %v302 = vld [vmem:[%s238] sm:$0xff]
        %v303 = vld [vmem:[%s238 + $0x8] sm:$0xff]
        %v304 = vld [vmem:[%s238 + $0x10] sm:$0xff]
        %v305 = vld [vmem:[%s238 + $0x18] sm:$0xff]
        %v306 = vld [vmem:[%s238 + $0x20] sm:$0xff]
        %v307 = vld [vmem:[%s238 + $0x28] sm:$0xff]
        %v308 = vld [vmem:[%s238 + $0x30] sm:$0xff]
        %v309 = vld [vmem:[%s238 + $0x38] sm:$0xff]
        %v310 = vld [vmem:[%s238 + $0x40] sm:$0xff]
        %v311 = vld [vmem:[%s238 + $0x48] sm:$0xff]
        %v312 = vld [vmem:[%s238 + $0x50] sm:$0xff]
        %v313 = vld [vmem:[%s238 + $0x58] sm:$0xff]
        %v314 = vld [vmem:[%s238 + $0x60] sm:$0xff]
        %v315 = vld [vmem:[%s238 + $0x68] sm:$0xff]
        %v316 = vld [vmem:[%s238 + $0x70] sm:$0xff]
        %v317 = vld [vmem:[%s238 + $0x78] sm:$0xff]
        %v318 = vld [vmem:[%s238 + $0x80] sm:$0xff]
        %v319 = vld [vmem:[%s238 + $0x88] sm:$0xff]
        %v320 = vld [vmem:[%s238 + $0x90] sm:$0xff]
        %v321 = vld [vmem:[%s238 + $0x98] sm:$0xff]
        %v322 = vld [vmem:[%s238 + $0xa0] sm:$0xff]
        %v323 = vld [vmem:[%s238 + $0xa8] sm:$0xff]
        %v324 = vld [vmem:[%s238 + $0xb0] sm:$0xff]
        %v325 = vld [vmem:[%s238 + $0xb8] sm:$0xff]
        %v326 = vld [vmem:[%s238 + $0xc0] sm:$0xff]
        %v327 = vld [vmem:[%s238 + $0xc8] sm:$0xff]
        %v328 = vld [vmem:[%s238 + $0xd0] sm:$0xff]
        %v329 = vld [vmem:[%s238 + $0xd8] sm:$0xff]
        %v330 = vld [vmem:[%s238 + $0xe0] sm:$0xff]
        %v331 = vld [vmem:[%s238 + $0xe8] sm:$0xff]
        %v332 = vld [vmem:[%s238 + $0xf0] sm:$0xff]
        %v333 = vld [vmem:[%s238 + $0xf8] sm:$0xff]
        %v334 = vld [vmem:[%s238 + $0x100] sm:$0xff]
        %v335 = vld [vmem:[%s238 + $0x108] sm:$0xff]
        %v336 = vld [vmem:[%s238 + $0x110] sm:$0xff]
        %v337 = vld [vmem:[%s238 + $0x118] sm:$0xff]
        %v338 = vld [vmem:[%s238 + $0x120] sm:$0xff]
        %v339 = vld [vmem:[%s238 + $0x128] sm:$0xff]
        %v340 = vld [vmem:[%s238 + $0x130] sm:$0xff]
        %v341 = vld [vmem:[%s238 + $0x138] sm:$0xff]
        %v342 = vld [vmem:[%s238 + $0x140] sm:$0xff]
        %v343 = vld [vmem:[%s238 + $0x148] sm:$0xff]
        %v344 = vld [vmem:[%s238 + $0x150] sm:$0xff]
        %v345 = vld [vmem:[%s238 + $0x158] sm:$0xff]
        %v346 = vld [vmem:[%s238 + $0x160] sm:$0xff]
        %v347 = vld [vmem:[%s238 + $0x168] sm:$0xff]
        %v348 = vld [vmem:[%s238 + $0x170] sm:$0xff]
        %v349 = vld [vmem:[%s238 + $0x178] sm:$0xff]
        %v350 = vld [vmem:[%s238 + $0x180] sm:$0xff]
        %v351 = vld [vmem:[%s238 + $0x188] sm:$0xff]
        %v352 = vld [vmem:[%s238 + $0x190] sm:$0xff]
        %v353 = vld [vmem:[%s238 + $0x198] sm:$0xff]
        %v354 = vld [vmem:[%s238 + $0x1a0] sm:$0xff]
        %v355 = vld [vmem:[%s238 + $0x1a8] sm:$0xff]
        %v356 = vld [vmem:[%s238 + $0x1b0] sm:$0xff]
        %v357 = vld [vmem:[%s238 + $0x1b8] sm:$0xff]
        %v358 = vld [vmem:[%s238 + $0x1c0] sm:$0xff]
        %v359 = vld [vmem:[%s238 + $0x1c8] sm:$0xff]
        %v360 = vld [vmem:[%s238 + $0x1d0] sm:$0xff]
        %v361 = vld [vmem:[%s238 + $0x1d8] sm:$0xff]
        %v362 = vld [vmem:[%s238 + $0x1e0] sm:$0xff]
        %v363 = vld [vmem:[%s238 + $0x1e8] sm:$0xff]
        %v364 = vld [vmem:[%s238 + $0x1f0] sm:$0xff]
        %v365 = vld [vmem:[%s238 + $0x1f8] sm:$0xff]
        %v368 = vunpack.c.l.b16 %v300
        %v369 = vunpack.c.h.b16 %v300
        %v370 = vunpack.c.l.b16 %v301
        %v371 = vunpack.c.h.b16 %v301
        %v372 = vpack.c.b16 %v368, %v368
        %v373 = vpack.c.b16 %v369, %v369
        %v374 = vpack.c.b16 %v370, %v370
        %v375 = vpack.c.b16 %v371, %v371
        %v444 = vunpack.c.l.b16 %v302
        %v445 = vunpack.c.h.b16 %v302
        %v446 = vunpack.c.l.b16 %v303
        %v447 = vunpack.c.h.b16 %v303
        %v448 = vunpack.c.l.b16 %v304
        %v449 = vunpack.c.h.b16 %v304
        %v450 = vunpack.c.l.b16 %v305
        %v451 = vunpack.c.h.b16 %v305
        %v452 = vunpack.c.l.b16 %v306
        %v453 = vunpack.c.h.b16 %v306
        %v454 = vunpack.c.l.b16 %v307
        %v455 = vunpack.c.h.b16 %v307
        %v456 = vunpack.c.l.b16 %v308
        %v457 = vunpack.c.h.b16 %v308
        %v458 = vunpack.c.l.b16 %v309
        %v459 = vunpack.c.h.b16 %v309
        %v460 = vunpack.c.l.b16 %v310
        %v461 = vunpack.c.h.b16 %v310
        %v462 = vunpack.c.l.b16 %v311
        %v463 = vunpack.c.h.b16 %v311
        %v464 = vunpack.c.l.b16 %v312
        %v465 = vunpack.c.h.b16 %v312
        %v466 = vunpack.c.l.b16 %v313
        %v467 = vunpack.c.h.b16 %v313
        %v468 = vunpack.c.l.b16 %v314
        %v469 = vunpack.c.h.b16 %v314
        %v470 = vunpack.c.l.b16 %v315
        %v471 = vunpack.c.h.b16 %v315
        %v472 = vunpack.c.l.b16 %v316
        %v473 = vunpack.c.h.b16 %v316
        %v474 = vunpack.c.l.b16 %v317
        %v475 = vunpack.c.h.b16 %v317
        %v476 = vunpack.c.l.b16 %v318
        %v477 = vunpack.c.h.b16 %v318
        %v478 = vunpack.c.l.b16 %v319
        %v479 = vunpack.c.h.b16 %v319
        %v480 = vunpack.c.l.b16 %v320
        %v481 = vunpack.c.h.b16 %v320
        %v482 = vunpack.c.l.b16 %v321
        %v483 = vunpack.c.h.b16 %v321
        %v484 = vunpack.c.l.b16 %v322
        %v485 = vunpack.c.h.b16 %v322
        %v486 = vunpack.c.l.b16 %v323
        %v487 = vunpack.c.h.b16 %v323
        %v488 = vunpack.c.l.b16 %v324
        %v489 = vunpack.c.h.b16 %v324
        %v490 = vunpack.c.l.b16 %v325
        %v491 = vunpack.c.h.b16 %v325
        %v492 = vunpack.c.l.b16 %v326
        %v493 = vunpack.c.h.b16 %v326
        %v494 = vunpack.c.l.b16 %v327
        %v495 = vunpack.c.h.b16 %v327
        %v496 = vunpack.c.l.b16 %v328
        %v497 = vunpack.c.h.b16 %v328
        %v498 = vunpack.c.l.b16 %v329
        %v499 = vunpack.c.h.b16 %v329
        %v500 = vunpack.c.l.b16 %v330
        %v501 = vunpack.c.h.b16 %v330
        %v502 = vunpack.c.l.b16 %v331
        %v503 = vunpack.c.h.b16 %v331
        %v504 = vunpack.c.l.b16 %v332
        %v505 = vunpack.c.h.b16 %v332
        %v506 = vunpack.c.l.b16 %v333
        %v507 = vunpack.c.h.b16 %v333
        %v508 = vunpack.c.l.b16 %v334
        %v509 = vunpack.c.h.b16 %v334
        %v510 = vunpack.c.l.b16 %v335
        %v511 = vunpack.c.h.b16 %v335
        %v512 = vunpack.c.l.b16 %v336
        %v513 = vunpack.c.h.b16 %v336
        %v514 = vunpack.c.l.b16 %v337
        %v515 = vunpack.c.h.b16 %v337
        %v516 = vunpack.c.l.b16 %v338
        %v517 = vunpack.c.h.b16 %v338
        %v518 = vunpack.c.l.b16 %v339
        %v519 = vunpack.c.h.b16 %v339
        %v520 = vunpack.c.l.b16 %v340
        %v521 = vunpack.c.h.b16 %v340
        %v522 = vunpack.c.l.b16 %v341
        %v523 = vunpack.c.h.b16 %v341
        %v524 = vunpack.c.l.b16 %v342
        %v525 = vunpack.c.h.b16 %v342
        %v526 = vunpack.c.l.b16 %v343
        %v527 = vunpack.c.h.b16 %v343
        %v528 = vunpack.c.l.b16 %v344
        %v529 = vunpack.c.h.b16 %v344
        %v530 = vunpack.c.l.b16 %v345
        %v531 = vunpack.c.h.b16 %v345
        %v532 = vunpack.c.l.b16 %v346
        %v533 = vunpack.c.h.b16 %v346
        %v534 = vunpack.c.l.b16 %v347
        %v535 = vunpack.c.h.b16 %v347
        %v536 = vunpack.c.l.b16 %v348
        %v537 = vunpack.c.h.b16 %v348
        %v538 = vunpack.c.l.b16 %v349
        %v539 = vunpack.c.h.b16 %v349
        %v540 = vunpack.c.l.b16 %v350
        %v541 = vunpack.c.h.b16 %v350
        %v542 = vunpack.c.l.b16 %v351
        %v543 = vunpack.c.h.b16 %v351
        %v544 = vunpack.c.l.b16 %v352
        %v545 = vunpack.c.h.b16 %v352
        %v546 = vunpack.c.l.b16 %v353
        %v547 = vunpack.c.h.b16 %v353
        %v548 = vunpack.c.l.b16 %v354
        %v549 = vunpack.c.h.b16 %v354
        %v550 = vunpack.c.l.b16 %v355
        %v551 = vunpack.c.h.b16 %v355
        %v552 = vunpack.c.l.b16 %v356
        %v553 = vunpack.c.h.b16 %v356
        %v554 = vunpack.c.l.b16 %v357
        %v555 = vunpack.c.h.b16 %v357
        %v556 = vunpack.c.l.b16 %v358
        %v557 = vunpack.c.h.b16 %v358
        %v558 = vunpack.c.l.b16 %v359
        %v559 = vunpack.c.h.b16 %v359
        %v560 = vunpack.c.l.b16 %v360
        %v561 = vunpack.c.h.b16 %v360
        %v562 = vunpack.c.l.b16 %v361
        %v563 = vunpack.c.h.b16 %v361
        %v564 = vunpack.c.l.b16 %v362
        %v565 = vunpack.c.h.b16 %v362
        %v566 = vunpack.c.l.b16 %v363
        %v567 = vunpack.c.h.b16 %v363
        %v568 = vunpack.c.l.b16 %v364
        %v569 = vunpack.c.h.b16 %v364
        %v570 = vunpack.c.l.b16 %v365
        %v571 = vunpack.c.h.b16 %v365
        %v572 = vpack.c.b16 %v446, %v444
        %v573 = vpack.c.b16 %v447, %v445
        %v574 = vpack.c.b16 %v450, %v448
        %v575 = vpack.c.b16 %v451, %v449
        %v576 = vpack.c.b16 %v454, %v452
        %v577 = vpack.c.b16 %v455, %v453
        %v578 = vpack.c.b16 %v458, %v456
        %v579 = vpack.c.b16 %v459, %v457
        %v580 = vpack.c.b16 %v462, %v460
        %v581 = vpack.c.b16 %v463, %v461
        %v582 = vpack.c.b16 %v466, %v464
        %v583 = vpack.c.b16 %v467, %v465
        %v584 = vpack.c.b16 %v470, %v468
        %v585 = vpack.c.b16 %v471, %v469
        %v586 = vpack.c.b16 %v474, %v472
        %v587 = vpack.c.b16 %v475, %v473
        %v588 = vpack.c.b16 %v478, %v476
        %v589 = vpack.c.b16 %v479, %v477
        %v590 = vpack.c.b16 %v482, %v480
        %v591 = vpack.c.b16 %v483, %v481
        %v592 = vpack.c.b16 %v486, %v484
        %v593 = vpack.c.b16 %v487, %v485
        %v594 = vpack.c.b16 %v490, %v488
        %v595 = vpack.c.b16 %v491, %v489
        %v596 = vpack.c.b16 %v494, %v492
        %v597 = vpack.c.b16 %v495, %v493
        %v598 = vpack.c.b16 %v498, %v496
        %v599 = vpack.c.b16 %v499, %v497
        %v600 = vpack.c.b16 %v502, %v500
        %v601 = vpack.c.b16 %v503, %v501
        %v602 = vpack.c.b16 %v506, %v504
        %v603 = vpack.c.b16 %v507, %v505
        %v604 = vpack.c.b16 %v510, %v508
        %v605 = vpack.c.b16 %v511, %v509
        %v606 = vpack.c.b16 %v514, %v512
        %v607 = vpack.c.b16 %v515, %v513
        %v608 = vpack.c.b16 %v518, %v516
        %v609 = vpack.c.b16 %v519, %v517
        %v610 = vpack.c.b16 %v522, %v520
        %v611 = vpack.c.b16 %v523, %v521
        %v612 = vpack.c.b16 %v526, %v524
        %v613 = vpack.c.b16 %v527, %v525
        %v614 = vpack.c.b16 %v530, %v528
        %v615 = vpack.c.b16 %v531, %v529
        %v616 = vpack.c.b16 %v534, %v532
        %v617 = vpack.c.b16 %v535, %v533
        %v618 = vpack.c.b16 %v538, %v536
        %v619 = vpack.c.b16 %v539, %v537
        %v620 = vpack.c.b16 %v542, %v540
        %v621 = vpack.c.b16 %v543, %v541
        %v622 = vpack.c.b16 %v546, %v544
        %v623 = vpack.c.b16 %v547, %v545
        %v624 = vpack.c.b16 %v550, %v548
        %v625 = vpack.c.b16 %v551, %v549
        %v626 = vpack.c.b16 %v554, %v552
        %v627 = vpack.c.b16 %v555, %v553
        %v628 = vpack.c.b16 %v558, %v556
        %v629 = vpack.c.b16 %v559, %v557
        %v630 = vpack.c.b16 %v562, %v560
        %v631 = vpack.c.b16 %v563, %v561
        %v632 = vpack.c.b16 %v566, %v564
        %v633 = vpack.c.b16 %v567, %v565
        %v634 = vpack.c.b16 %v570, %v568
        %v635 = vpack.c.b16 %v571, %v569
        %700 = vmatprep.subr.bf16.mxu0 %v573
        %701 = vmatpush1.bf16.msra.mxu0 %v572
        %702 = vmatprep.subr.bf16.mxu0 %v575
        %703 = vmatpush1.bf16.msra.mxu0 %v574
        %704 = vmatprep.subr.bf16.mxu0 %v577
        %705 = vmatpush1.bf16.msra.mxu0 %v576
        %706 = vmatprep.subr.bf16.mxu0 %v579
        %707 = vmatpush1.bf16.msra.mxu0 %v578
        %708 = vmatprep.subr.bf16.mxu0 %v581
        %709 = vmatpush1.bf16.msra.mxu0 %v580
        %710 = vmatprep.subr.bf16.mxu0 %v583
        %711 = vmatpush1.bf16.msra.mxu0 %v582
        %712 = vmatprep.subr.bf16.mxu0 %v585
        %713 = vmatpush1.bf16.msra.mxu0 %v584
        %714 = vmatprep.subr.bf16.mxu0 %v587
        %715 = vmatpush1.bf16.msra.mxu0 %v586
        %716 = vmatprep.subr.bf16.mxu0 %v589
        %717 = vmatpush1.bf16.msra.mxu0 %v588
        %718 = vmatprep.subr.bf16.mxu0 %v591
        %719 = vmatpush1.bf16.msra.mxu0 %v590
        %720 = vmatprep.subr.bf16.mxu0 %v593
        %721 = vmatpush1.bf16.msra.mxu0 %v592
        %722 = vmatprep.subr.bf16.mxu0 %v595
        %723 = vmatpush1.bf16.msra.mxu0 %v594
        %724 = vmatprep.subr.bf16.mxu0 %v597
        %725 = vmatpush1.bf16.msra.mxu0 %v596
        %726 = vmatprep.subr.bf16.mxu0 %v599
        %727 = vmatpush1.bf16.msra.mxu0 %v598
        %728 = vmatprep.subr.bf16.mxu0 %v601
        %729 = vmatpush1.bf16.msra.mxu0 %v600
        %730 = vmatprep.subr.bf16.mxu0 %v603
        %731 = vmatpush1.bf16.msra.mxu0 %v602
        %732 = vmatprep.mubr.bf16.mxu0 %v373
        %733 = vmatmul.mubr.bf16.gmra.mrb[0].mxu0 %v372
        %v734 = vpop.f32.mrb[0].mxu0
        %v735 = vadd.f32 0.0, %v734
        %v736 = vpop.f32.mrb[0].mxu0
        %v737 = vadd.f32 0.0, %v736
        %v738 = vpop.f32.mrb[0].mxu0
        %v739 = vpop.f32.mrb[0].mxu0
        %740 = vdwg.mxu0
        %741 = vmatprep.subr.bf16.mxu0 %v605
        %742 = vmatpush1.bf16.msra.mxu0 %v604
        %743 = vmatprep.subr.bf16.mxu0 %v607
        %744 = vmatpush1.bf16.msra.mxu0 %v606
        %745 = vmatprep.subr.bf16.mxu0 %v609
        %746 = vmatpush1.bf16.msra.mxu0 %v608
        %747 = vmatprep.subr.bf16.mxu0 %v611
        %748 = vmatpush1.bf16.msra.mxu0 %v610
        %749 = vmatprep.subr.bf16.mxu0 %v613
        %750 = vmatpush1.bf16.msra.mxu0 %v612
        %751 = vmatprep.subr.bf16.mxu0 %v615
        %752 = vmatpush1.bf16.msra.mxu0 %v614
        %753 = vmatprep.subr.bf16.mxu0 %v617
        %754 = vmatpush1.bf16.msra.mxu0 %v616
        %755 = vmatprep.subr.bf16.mxu0 %v619
        %756 = vmatpush1.bf16.msra.mxu0 %v618
        %757 = vmatprep.subr.bf16.mxu0 %v621
        %758 = vmatpush1.bf16.msra.mxu0 %v620
        %759 = vmatprep.subr.bf16.mxu0 %v623
        %760 = vmatpush1.bf16.msra.mxu0 %v622
        %761 = vmatprep.subr.bf16.mxu0 %v625
        %762 = vmatpush1.bf16.msra.mxu0 %v624
        %763 = vmatprep.subr.bf16.mxu0 %v627
        %764 = vmatpush1.bf16.msra.mxu0 %v626
        %765 = vmatprep.subr.bf16.mxu0 %v629
        %766 = vmatpush1.bf16.msra.mxu0 %v628
        %767 = vmatprep.subr.bf16.mxu0 %v631
        %768 = vmatpush1.bf16.msra.mxu0 %v630
        %769 = vmatprep.subr.bf16.mxu0 %v633
        %770 = vmatpush1.bf16.msra.mxu0 %v632
        %771 = vmatprep.subr.bf16.mxu0 %v635
        %772 = vmatpush1.bf16.msra.mxu0 %v634
        %773 = vmatprep.mubr.bf16.mxu0 %v375
        %774 = vmatmul.mubr.bf16.gmra.mrb[0].mxu0 %v374
        %v775 = vpop.f32.mrb[0].mxu0
        %v776 = vadd.f32 %v735, %v775
        %v777 = vpop.f32.mrb[0].mxu0
        %v778 = vadd.f32 %v737, %v777
        %v779 = vpop.f32.mrb[0].mxu0
        %v780 = vpop.f32.mrb[0].mxu0
        %781 = vdwg.mxu0
        %v782 = vadd.f32 %v298, %v776
        %v783 = vadd.f32 %v299, %v778
        %784 = vst [vmem:[#allocation2] sm:$0xff] %v782
        %785 = vst [vmem:[#allocation2 + $0x8] sm:$0xff] %v783
        // Predicated region
        $region49: #{tpu_custom_call.1} parent=31 // pred_check
          %p786 = pneg %p280
        $region50: #{tpu_custom_call.1} parent=31 // pred_check_branch
          %788 = sbr.rel (%p786) target = $region52
        $region51: #{tpu_custom_call.1} parent=31 // pred_region
          %v789 = vld [vmem:[#allocation2] sm:$0xff]
          %v790 = vld [vmem:[#allocation2 + $0x8] sm:$0xff]
          %v791 = vand.u32 2147483647, %v789
          %v792 = vand.u32 2147483647, %v790
          %v793 = vadd.f32 %v791, 1.0
          %v794 = vadd.f32 %v792, 1.0
          %v795 = vlog2.pop %v793
          %v796 = vmul.f32 %v795, 0.6931472
          %v797 = vlog2.pop %v794
          %v798 = vmul.f32 %v797, 0.6931472
          %v799 = vpack.c.bf16 %v796, %v796
          %v800 = vpack.c.bf16 %v798, %v798
          %v803 = vunpack.c.l.b16 %v799
          %v804 = vunpack.c.l.b16 %v800
          %v805 = vpack.c.b16 %v804, %v803
          %807 = vst [vmem:[%s274] sm:$0xff] %v805
        $region52: #{tpu_custom_call.1} parent=31 // pred_fallthru
          _
        %s808 = sand.u32 %s132, 1
        %s809 = scalar_lea.sflag [#allocation5], %s808
        %s810 = sand.u32 %s132, 1
        %s811 = smul.addr %s810, 8
        %s812 = scalar_lea.vmem [#allocation9], %s811
        // Predicated region
        $region53: #{tpu_custom_call.1} parent=31 // pred_check
          %p813 = pneg %p142
        $region54: #{tpu_custom_call.1} parent=31 // pred_check_branch
          %815 = sbr.rel (%p813) target = $region56
        $region55: #{tpu_custom_call.1} parent=31 // pred_region
          %s816 = smul.u32 2, %s27
          %s818 = ssub.s32 128, 128
          %819 = vsyncadd %s809, %s818
          %s820 = smul.addr %s26, 12
          %s821 = sadd.s32 %s816, %s820
          %s822 = smul.addr %s821, 64
          %s823 = scalar_lea.hbm %s3, %s822
          %s825 = sshll.u32 %s812, 4
          %s826 = int_to_ptr.vmem [resolvable:$true] %s825
          %828 = dma.vmem_to_hbm [thread:$0]  %s826, 128, %s823, %s809
        $region56: #{tpu_custom_call.1} parent=31 // pred_fallthru
          _
      $region32: #{tpu_custom_call.1} parent=5 // pred_fallthru
        _
      %p829 = scmp.le.s32.totalorder 2, %s16
      // Predicated region
      $region57: #{tpu_custom_call.1} parent=5 // pred_check
        %p830 = pneg %p829
      $region58: #{tpu_custom_call.1} parent=5 // pred_check_branch
        %832 = sbr.rel (%p830) target = $region60
      $region59: #{tpu_custom_call.1} parent=5 // pred_region
        %s833 = ssub.s32 %s16, 2
        // Predicated region
        $region61: #{tpu_custom_call.1} parent=59 // pred_check
          %p834 = pneg %p148
        $region62: #{tpu_custom_call.1} parent=59 // pred_check_branch
          %836 = sbr.rel (%p834) target = $region64
        $region63: #{tpu_custom_call.1} parent=59 // pred_region
          %s837 = sand.u32 %s133, 1
          %s838 = scalar_lea.sflag [#allocation5], %s837
          %s839 = sand.u32 %s133, 1
          %s840 = smul.addr %s839, 8
          %s841 = scalar_lea.vmem [#allocation9], %s840
          %842 = dma.done %s838, 128
        $region64: #{tpu_custom_call.1} parent=59 // pred_fallthru
          _
      $region60: #{tpu_custom_call.1} parent=5 // pred_fallthru
        _
    $region6: #{tpu_custom_call.1} parent=1 // loop_footer
      %s20 = sadd.s32 1, %s16
    $region7: #{tpu_custom_call.1} parent=1 // loop_footer_branch
      %15 = sbr.rel target = $region3
    $region8: #{tpu_custom_call.1} parent=1 // loop_exit
      _
    %843 = vsyncpa [#allocation4], 1
    %s844 = scalar_lea.sflag [#allocation4], 1
    %845 = vsyncpa %s844, 1
    %846 = vsyncpa [#allocation7], 1
    %s847 = scalar_lea.sflag [#allocation7], 1
    %848 = vsyncpa %s847, 1
    %849 = vsyncpa [#allocation5], 1
    %s850 = scalar_lea.sflag [#allocation5], 1
    %851 = vsyncpa %s850, 1

</llo_original>
